<compile_context>
chip_gen: v5e
topology: v5e:2x2
jax: 0.10.0
libtpu: 0.0.40
codegen_flags: <defaults>
</compile_context>

<pallas_src>
import functools

import jax
import jax.numpy as jnp
from jax.experimental import pallas as pl
from jax.experimental.pallas import tpu as pltpu

_PAD = 128                      # lane-dense feature width
_LAYER_SIZES = (32, 64, 128, 64, 32)


def _round_up(n, m):
    return ((n + m - 1) // m) * m


# --------------------------------------------------------------------------
# Kernel: one batch tile through N stacked Q-networks (interleaved).
# --------------------------------------------------------------------------
def _mlp_kernel(x_ref, w_ref, b_ref, q_ref):
    """x_ref: (TILE_B, 128) bf16     lane-dense padded states (shared by all nets)
       w_ref: (N, L, 128, 128) bf16  constant index map -> VMEM-resident
       b_ref: (N, L, 1, 128)   f32
       q_ref: (TILE_B, 128)    f32   packed: net n's Q in lanes [n*stride, ...)"""
    n_nets = w_ref.shape[0]
    n_layers = w_ref.shape[1]

    x = x_ref[...]
    h = [x for _ in range(n_nets)]          # shared input for layer 0

    # Layer-outer / net-inner: n_nets independent 128-wide matmuls per layer,
    # issued back-to-back, hide each other's MXU result latency.
    for l in range(n_layers - 1):
        acc = [jnp.dot(h[n], w_ref[n, l, :, :],
                       preferred_element_type=jnp.float32)
               for n in range(n_nets)]
        h = [jnp.maximum(acc[n] + b_ref[n, l, :, :], 0.0).astype(jnp.bfloat16)
             for n in range(n_nets)]

    # Final layer: host packing shifted each net's output columns + bias into
    # its own lane slot, so summing the per-net results packs every net's
    # Q-values into one lane-dense f32 slab (single unmasked store).
    l = n_layers - 1
    out = None
    for n in range(n_nets):
        acc = jnp.dot(h[n], w_ref[n, l, :, :],
                      preferred_element_type=jnp.float32) + b_ref[n, l, :, :]
        out = acc if out is None else out + acc
    q_ref[...] = out


# --------------------------------------------------------------------------
# Parameter init / packing (packing is called ONCE, not per forward).
# --------------------------------------------------------------------------
def init_ddqn_params(key, input_dim, output_dim=2):
    """PyTorch nn.Linear-style init: U[-1/sqrt(fan_in), +1/sqrt(fan_in)].
    Weights stored (in_features, out_features): y = x @ W + b (== x @ W_pt.T)."""
    dims = (input_dim,) + _LAYER_SIZES + (output_dim,)
    params = []
    for i in range(len(dims) - 1):
        fan_in, fan_out = dims[i], dims[i + 1]
        key, kw, kb = jax.random.split(key, 3)
        bound = 1.0 / jnp.sqrt(jnp.float32(fan_in))
        w = jax.random.uniform(kw, (fan_in, fan_out), jnp.float32, -bound, bound)
        b = jax.random.uniform(kb, (fan_out,), jnp.float32, -bound, bound)
        params.append((w, b))
    return params


def pack_ddqn_params(*param_sets):
    """Stack + zero-pad one or more Q-networks for the kernel.

    Call once at agent init, and again only after a target-network sync.
    Returns (w_all bf16 (N,L,128,128), b_all f32 (N,L,1,128), out_dim).
    Last layer of net n is shifted to lane offset n*(128//N) (packed output).
    Zero padding is numerically exact for a ReLU MLP."""
    n_nets = len(param_sets)
    n_layers = len(param_sets[0])
    stride = _PAD // n_nets
    out_dim = int(param_sets[0][-1][0].shape[1])
    assert out_dim <= stride, "output dim too large for packed-lane output"

    w_all, b_all = [], []
    for n, params in enumerate(param_sets):
        wl, bl = [], []
        for l, (w, b) in enumerate(params):
            w = jnp.asarray(w, jnp.float32)
            b = jnp.reshape(jnp.asarray(b, jnp.float32), (1, -1))
            fi, fo = w.shape
            assert fi <= _PAD and fo <= _PAD, "feature dim > 128 needs K-tiling"
            off = n * stride if l == n_layers - 1 else 0
            wp = jnp.zeros((_PAD, _PAD), jnp.float32).at[:fi, off:off + fo].set(w)
            bp = jnp.zeros((1, _PAD), jnp.float32).at[:, off:off + fo].set(b)
            wl.append(wp)
            bl.append(bp)
        w_all.append(jnp.stack(wl))
        b_all.append(jnp.stack(bl))
    return (jnp.stack(w_all).astype(jnp.bfloat16),
            jnp.stack(b_all).astype(jnp.float32),
            out_dim)


# --------------------------------------------------------------------------
# Jitted apply: pad/cast x -> pallas_call -> per-net slices, all in one launch.
# (Each distinct batch shape triggers one retrace — latency hazard only.)
# --------------------------------------------------------------------------
@functools.partial(jax.jit, static_argnames=("out_dim",))
def _ddqn_apply(x, w_all, b_all, *, out_dim):
    x = jnp.asarray(x, jnp.float32)
    if x.ndim == 1:                       # mimics DDQN_Agent.to_tensor unsqueeze(0)
        x = x[None, :]
    batch, in_dim = x.shape
    assert in_dim <= _PAD, "input dim > 128 needs K-tiling"
    n_nets, n_layers = int(w_all.shape[0]), int(w_all.shape[1])
    stride = _PAD // n_nets

    tile_b = min(128, _round_up(batch, 16))          # bf16-sublane friendly
    padded_batch = _round_up(batch, tile_b)

    # bf16 + pad under jit: half the activation DMA, no in-kernel cast.
    x_pad = jnp.pad(x.astype(jnp.bfloat16),
                    ((0, padded_batch - batch), (0, _PAD - in_dim)))

    q = pl.pallas_call(
        _mlp_kernel,
        out_shape=jax.ShapeDtypeStruct((padded_batch, _PAD), jnp.float32),
        grid=(padded_batch // tile_b,),
        in_specs=[
            # activations: one batch tile per grid step
            pl.BlockSpec((tile_b, _PAD), lambda i: (i, 0)),
            # stacked weights/biases: constant index map -> VMEM-resident
            pl.BlockSpec((n_nets, n_layers, _PAD, _PAD), lambda i: (0, 0, 0, 0)),
            pl.BlockSpec((n_nets, n_layers, 1, _PAD), lambda i: (0, 0, 0, 0)),
        ],
        out_specs=pl.BlockSpec((tile_b, _PAD), lambda i: (i, 0)),
        compiler_params=pltpu.CompilerParams(
            dimension_semantics=("parallel",)),
    )(x_pad, w_all, b_all)

    return tuple(q[:batch, n * stride:n * stride + out_dim]
                 for n in range(n_nets))


def ddqn_forward(x, packed):
    """DDQN_Agent.forward semantics: online Q-network only."""
    w_all, b_all, out_dim = packed
    return _ddqn_apply(x, w_all, b_all, out_dim=out_dim)[0]


def ddqn_dual_forward(x, packed_dual):
    """Fused online + target evaluation in one pallas_call (DDQN train step)."""
    w_all, b_all, out_dim = packed_dual
    q = _ddqn_apply(x, w_all, b_all, out_dim=out_dim)
    return q[0], q[1]


# --------------------------------------------------------------------------
# Pure-JAX f32 reference.
# --------------------------------------------------------------------------
def ddqn_forward_ref(x, params):
    x = jnp.asarray(x, jnp.float32)
    if x.ndim == 1:
        x = x[None, :]
    h = x
    for i, (w, b) in enumerate(params):
        h = h @ w + jnp.reshape(b, (1, -1))
        if i < len(params) - 1:
            h = jnp.maximum(h, 0.0)
    return h


# TODO(synk): the rest of DDQN_Agent (replay buffer, epsilon-greedy action
# selection, Adam/MSE training loop, grad clipping, target sync) is host-side
# control logic, not part of forward(), and is intentionally not translated.

if __name__ == "__main__":
    key = jax.random.PRNGKey(0)
    k_online, k_target, k_x1, k_x2 = jax.random.split(key, 4)

    INPUT_DIM = 4    # CartPole-style state vector
    OUTPUT_DIM = 2   # default `output=2` in DDQN_Agent
    BATCH = 2

    online_params = init_ddqn_params(k_online, INPUT_DIM, OUTPUT_DIM)
    target_params = init_ddqn_params(k_target, INPUT_DIM, OUTPUT_DIM)

    # Packing happens once here (and again only after a target sync).
    packed_online = pack_ddqn_params(online_params)
    packed_dual = pack_ddqn_params(online_params, target_params)

    # (1) Module forward semantics: small batch through the online net.
    x = jax.random.normal(k_x1, (BATCH, INPUT_DIM), jnp.float32)
    q = jax.block_until_ready(ddqn_forward(x, packed_online))
    q_ref = ddqn_forward_ref(x, online_params)
    assert q.shape == (BATCH, OUTPUT_DIM)
    assert jnp.allclose(q, q_ref, atol=5e-2, rtol=5e-2), (q, q_ref)

    # (2) Single unbatched state (mimics to_tensor's unsqueeze(0)).
    s = jax.random.normal(k_x2, (INPUT_DIM,), jnp.float32)
    qs = jax.block_until_ready(ddqn_forward(s, packed_online))
    assert qs.shape == (1, OUTPUT_DIM)
    assert jnp.allclose(qs, ddqn_forward_ref(s, online_params),
                        atol=5e-2, rtol=5e-2)

    # (3) Fused online+target on a replay-sized minibatch (exercises the
    #     batch grid, padding, packed dual output, and the jitted path twice).
    xb = jax.random.normal(k_x1, (200, INPUT_DIM), jnp.float32)
    q_on, q_tg = jax.block_until_ready(
        ddqn_dual_forward(xb, packed_dual))
    assert q_on.shape == (200, OUTPUT_DIM) and q_tg.shape == (200, OUTPUT_DIM)
    assert jnp.allclose(q_on, ddqn_forward_ref(xb, online_params),
                        atol=5e-2, rtol=5e-2)
    assert jnp.allclose(q_tg, ddqn_forward_ref(xb, target_params),
                        atol=5e-2, rtol=5e-2)

    print("KERNEL_OK")
</pallas_src>

<mosaic_0001>
module attributes {stable_mosaic.version = 11 : i64} {
  func.func @_mlp_kernel(%arg0: i32, %arg1: memref<16x128xbf16, #tpu.memory_space<vmem>>, %arg2: memref<1x6x128x128xbf16, #tpu.memory_space<vmem>>, %arg3: memref<1x6x1x128xf32, #tpu.memory_space<vmem>>, %arg4: memref<16x128xf32, #tpu.memory_space<vmem>>) attributes {dimension_semantics = [#tpu.dimension_semantics<parallel>], iteration_bounds = array<i64: 1>, scalar_prefetch = 0 : i64, scratch_operands = 0 : i64, tpu.core_type = #tpu.core_type<tc>, window_params = [{transform_indices = @transform_0, window_bounds = array<i64: 16, 128>}, {pipeline_mode = #tpu.pipeline_mode<synchronous>, transform_indices = @transform_1, window_bounds = array<i64: 1, 6, 128, 128>}, {pipeline_mode = #tpu.pipeline_mode<synchronous>, transform_indices = @transform_2, window_bounds = array<i64: 1, 6, 1, 128>}, {transform_indices = @transform_3, window_bounds = array<i64: 16, 128>}]} {
    %c0 = arith.constant 0 : index
    %c0_0 = arith.constant 0 : index
    %0 = vector.load %arg1[%c0, %c0_0] : memref<16x128xbf16, #tpu.memory_space<vmem>>, vector<16x128xbf16>
    %c0_1 = arith.constant 0 : index
    %c0_2 = arith.constant 0 : index
    %c0_3 = arith.constant 0 : index
    %c0_4 = arith.constant 0 : index
    %1 = vector.load %arg2[%c0_1, %c0_2, %c0_3, %c0_4] : memref<1x6x128x128xbf16, #tpu.memory_space<vmem>>, vector<1x1x128x128xbf16>
    %2 = vector.shape_cast %1 : vector<1x1x128x128xbf16> to vector<128x128xbf16>
    %cst = arith.constant dense<0.000000e+00> : vector<16x128xf32>
    %3 = tpu.matmul %0, %2, %cst {dimension_numbers = #tpu.dot_dimension_numbers<[1], [0], [0], [1], [0, 0, 1, 1], [], []>} : vector<16x128xbf16>, vector<128x128xbf16>, vector<16x128xf32> -> vector<16x128xf32>
    %c0_5 = arith.constant 0 : index
    %c0_6 = arith.constant 0 : index
    %c0_7 = arith.constant 0 : index
    %c0_8 = arith.constant 0 : index
    %4 = vector.load %arg3[%c0_5, %c0_6, %c0_7, %c0_8] : memref<1x6x1x128xf32, #tpu.memory_space<vmem>>, vector<1x1x1x128xf32>
    %5 = vector.shape_cast %4 : vector<1x1x1x128xf32> to vector<1x128xf32>
    %6 = vector.broadcast %5 : vector<1x128xf32> to vector<16x128xf32>
    %7 = arith.addf %3, %6 : vector<16x128xf32>
    %cst_9 = arith.constant 0.000000e+00 : f32
    %8 = vector.broadcast %cst_9 : f32 to vector<16x128xf32>
    %9 = arith.maximumf %7, %8 : vector<16x128xf32>
    %10 = arith.truncf %9 : vector<16x128xf32> to vector<16x128xbf16>
    %c0_10 = arith.constant 0 : index
    %c1 = arith.constant 1 : index
    %c0_11 = arith.constant 0 : index
    %c0_12 = arith.constant 0 : index
    %11 = vector.load %arg2[%c0_10, %c1, %c0_11, %c0_12] : memref<1x6x128x128xbf16, #tpu.memory_space<vmem>>, vector<1x1x128x128xbf16>
    %12 = vector.shape_cast %11 : vector<1x1x128x128xbf16> to vector<128x128xbf16>
    %cst_13 = arith.constant dense<0.000000e+00> : vector<16x128xf32>
    %13 = tpu.matmul %10, %12, %cst_13 {dimension_numbers = #tpu.dot_dimension_numbers<[1], [0], [0], [1], [0, 0, 1, 1], [], []>} : vector<16x128xbf16>, vector<128x128xbf16>, vector<16x128xf32> -> vector<16x128xf32>
    %c0_14 = arith.constant 0 : index
    %c1_15 = arith.constant 1 : index
    %c0_16 = arith.constant 0 : index
    %c0_17 = arith.constant 0 : index
    %14 = vector.load %arg3[%c0_14, %c1_15, %c0_16, %c0_17] : memref<1x6x1x128xf32, #tpu.memory_space<vmem>>, vector<1x1x1x128xf32>
    %15 = vector.shape_cast %14 : vector<1x1x1x128xf32> to vector<1x128xf32>
    %16 = vector.broadcast %15 : vector<1x128xf32> to vector<16x128xf32>
    %17 = arith.addf %13, %16 : vector<16x128xf32>
    %cst_18 = arith.constant 0.000000e+00 : f32
    %18 = vector.broadcast %cst_18 : f32 to vector<16x128xf32>
    %19 = arith.maximumf %17, %18 : vector<16x128xf32>
    %20 = arith.truncf %19 : vector<16x128xf32> to vector<16x128xbf16>
    %c0_19 = arith.constant 0 : index
    %c2 = arith.constant 2 : index
    %c0_20 = arith.constant 0 : index
    %c0_21 = arith.constant 0 : index
    %21 = vector.load %arg2[%c0_19, %c2, %c0_20, %c0_21] : memref<1x6x128x128xbf16, #tpu.memory_space<vmem>>, vector<1x1x128x128xbf16>
    %22 = vector.shape_cast %21 : vector<1x1x128x128xbf16> to vector<128x128xbf16>
    %cst_22 = arith.constant dense<0.000000e+00> : vector<16x128xf32>
    %23 = tpu.matmul %20, %22, %cst_22 {dimension_numbers = #tpu.dot_dimension_numbers<[1], [0], [0], [1], [0, 0, 1, 1], [], []>} : vector<16x128xbf16>, vector<128x128xbf16>, vector<16x128xf32> -> vector<16x128xf32>
    %c0_23 = arith.constant 0 : index
    %c2_24 = arith.constant 2 : index
    %c0_25 = arith.constant 0 : index
    %c0_26 = arith.constant 0 : index
    %24 = vector.load %arg3[%c0_23, %c2_24, %c0_25, %c0_26] : memref<1x6x1x128xf32, #tpu.memory_space<vmem>>, vector<1x1x1x128xf32>
    %25 = vector.shape_cast %24 : vector<1x1x1x128xf32> to vector<1x128xf32>
    %26 = vector.broadcast %25 : vector<1x128xf32> to vector<16x128xf32>
    %27 = arith.addf %23, %26 : vector<16x128xf32>
    %cst_27 = arith.constant 0.000000e+00 : f32
    %28 = vector.broadcast %cst_27 : f32 to vector<16x128xf32>
    %29 = arith.maximumf %27, %28 : vector<16x128xf32>
    %30 = arith.truncf %29 : vector<16x128xf32> to vector<16x128xbf16>
    %c0_28 = arith.constant 0 : index
    %c3 = arith.constant 3 : index
    %c0_29 = arith.constant 0 : index
    %c0_30 = arith.constant 0 : index
    %31 = vector.load %arg2[%c0_28, %c3, %c0_29, %c0_30] : memref<1x6x128x128xbf16, #tpu.memory_space<vmem>>, vector<1x1x128x128xbf16>
    %32 = vector.shape_cast %31 : vector<1x1x128x128xbf16> to vector<128x128xbf16>
    %cst_31 = arith.constant dense<0.000000e+00> : vector<16x128xf32>
    %33 = tpu.matmul %30, %32, %cst_31 {dimension_numbers = #tpu.dot_dimension_numbers<[1], [0], [0], [1], [0, 0, 1, 1], [], []>} : vector<16x128xbf16>, vector<128x128xbf16>, vector<16x128xf32> -> vector<16x128xf32>
    %c0_32 = arith.constant 0 : index
    %c3_33 = arith.constant 3 : index
    %c0_34 = arith.constant 0 : index
    %c0_35 = arith.constant 0 : index
    %34 = vector.load %arg3[%c0_32, %c3_33, %c0_34, %c0_35] : memref<1x6x1x128xf32, #tpu.memory_space<vmem>>, vector<1x1x1x128xf32>
    %35 = vector.shape_cast %34 : vector<1x1x1x128xf32> to vector<1x128xf32>
    %36 = vector.broadcast %35 : vector<1x128xf32> to vector<16x128xf32>
    %37 = arith.addf %33, %36 : vector<16x128xf32>
    %cst_36 = arith.constant 0.000000e+00 : f32
    %38 = vector.broadcast %cst_36 : f32 to vector<16x128xf32>
    %39 = arith.maximumf %37, %38 : vector<16x128xf32>
    %40 = arith.truncf %39 : vector<16x128xf32> to vector<16x128xbf16>
    %c0_37 = arith.constant 0 : index
    %c4 = arith.constant 4 : index
    %c0_38 = arith.constant 0 : index
    %c0_39 = arith.constant 0 : index
    %41 = vector.load %arg2[%c0_37, %c4, %c0_38, %c0_39] : memref<1x6x128x128xbf16, #tpu.memory_space<vmem>>, vector<1x1x128x128xbf16>
    %42 = vector.shape_cast %41 : vector<1x1x128x128xbf16> to vector<128x128xbf16>
    %cst_40 = arith.constant dense<0.000000e+00> : vector<16x128xf32>
    %43 = tpu.matmul %40, %42, %cst_40 {dimension_numbers = #tpu.dot_dimension_numbers<[1], [0], [0], [1], [0, 0, 1, 1], [], []>} : vector<16x128xbf16>, vector<128x128xbf16>, vector<16x128xf32> -> vector<16x128xf32>
    %c0_41 = arith.constant 0 : index
    %c4_42 = arith.constant 4 : index
    %c0_43 = arith.constant 0 : index
    %c0_44 = arith.constant 0 : index
    %44 = vector.load %arg3[%c0_41, %c4_42, %c0_43, %c0_44] : memref<1x6x1x128xf32, #tpu.memory_space<vmem>>, vector<1x1x1x128xf32>
    %45 = vector.shape_cast %44 : vector<1x1x1x128xf32> to vector<1x128xf32>
    %46 = vector.broadcast %45 : vector<1x128xf32> to vector<16x128xf32>
    %47 = arith.addf %43, %46 : vector<16x128xf32>
    %cst_45 = arith.constant 0.000000e+00 : f32
    %48 = vector.broadcast %cst_45 : f32 to vector<16x128xf32>
    %49 = arith.maximumf %47, %48 : vector<16x128xf32>
    %50 = arith.truncf %49 : vector<16x128xf32> to vector<16x128xbf16>
    %c0_46 = arith.constant 0 : index
    %c5 = arith.constant 5 : index
    %c0_47 = arith.constant 0 : index
    %c0_48 = arith.constant 0 : index
    %51 = vector.load %arg2[%c0_46, %c5, %c0_47, %c0_48] : memref<1x6x128x128xbf16, #tpu.memory_space<vmem>>, vector<1x1x128x128xbf16>
    %52 = vector.shape_cast %51 : vector<1x1x128x128xbf16> to vector<128x128xbf16>
    %cst_49 = arith.constant dense<0.000000e+00> : vector<16x128xf32>
    %53 = tpu.matmul %50, %52, %cst_49 {dimension_numbers = #tpu.dot_dimension_numbers<[1], [0], [0], [1], [0, 0, 1, 1], [], []>} : vector<16x128xbf16>, vector<128x128xbf16>, vector<16x128xf32> -> vector<16x128xf32>
    %c0_50 = arith.constant 0 : index
    %c5_51 = arith.constant 5 : index
    %c0_52 = arith.constant 0 : index
    %c0_53 = arith.constant 0 : index
    %54 = vector.load %arg3[%c0_50, %c5_51, %c0_52, %c0_53] : memref<1x6x1x128xf32, #tpu.memory_space<vmem>>, vector<1x1x1x128xf32>
    %55 = vector.shape_cast %54 : vector<1x1x1x128xf32> to vector<1x128xf32>
    %56 = vector.broadcast %55 : vector<1x128xf32> to vector<16x128xf32>
    %57 = arith.addf %53, %56 : vector<16x128xf32>
    %c0_54 = arith.constant 0 : index
    %c0_55 = arith.constant 0 : index
    %58 = vector.load %arg4[%c0_54, %c0_55] : memref<16x128xf32, #tpu.memory_space<vmem>>, vector<16x128xf32>
    tpu.vector_store %arg4[%c0_54, %c0_55], %57 {strides = array<i32>} : memref<16x128xf32, #tpu.memory_space<vmem>>, vector<16x128xf32>,
    return
  }
  func.func @transform_0(%arg0: i32) -> (i32, i32) {
    %c0_i32 = arith.constant 0 : i32
    %c0_i32_0 = arith.constant 0 : i32
    return %arg0, %c0_i32 : i32, i32
  }
  func.func @transform_1(%arg0: i32) -> (i32, i32, i32, i32) {
    %c0_i32 = arith.constant 0 : i32
    %c0_i32_0 = arith.constant 0 : i32
    %c0_i32_1 = arith.constant 0 : i32
    %c0_i32_2 = arith.constant 0 : i32
    %c0_i32_3 = arith.constant 0 : i32
    return %c0_i32, %c0_i32_0, %c0_i32_1, %c0_i32_2 : i32, i32, i32, i32
  }
  func.func @transform_2(%arg0: i32) -> (i32, i32, i32, i32) {
    %c0_i32 = arith.constant 0 : i32
    %c0_i32_0 = arith.constant 0 : i32
    %c0_i32_1 = arith.constant 0 : i32
    %c0_i32_2 = arith.constant 0 : i32
    %c0_i32_3 = arith.constant 0 : i32
    return %c0_i32, %c0_i32_0, %c0_i32_1, %c0_i32_2 : i32, i32, i32, i32
  }
  func.func @transform_3(%arg0: i32) -> (i32, i32) {
    %c0_i32 = arith.constant 0 : i32
    %c0_i32_0 = arith.constant 0 : i32
    return %arg0, %c0_i32 : i32, i32
  }
}

</mosaic_0001>

<llo_original>
// kernel: _ddqn_apply.1
$region0: #{_ddqn_apply.1}
  #allocation0 [shape = 'u32[]', space=smem, size = 0x4, offset = 0x4, fixed_abs, tag = 'smem constant byte address 0x4 - core index']
  #allocation1 [shape = 'u32[72,128]{1,0:T(1,128)}', space=vmem, size = 0x9000, scoped, tag = 'internal scratch']
  %s0 = inlined_call_operand.vmem [shape: bf16[16,128], index: 0, kind: input, shape index: {}]
  %s1 = inlined_call_operand.hbm [shape: bf16[1,6,128,128], index: 1, kind: input, shape index: {}]
  %s2 = inlined_call_operand.vmem [shape: f32[1,6,1,128], index: 2, kind: input, shape index: {}]
  %s3 = inlined_call_operand.vmem [shape: f32[16,128], index: 3, kind: output, shape index: {}]
  %s4 = sld [smem:[#allocation0]]
  $region26: #{_ddqn_apply.1} parent=0
    _
  %s6 = ssub.s32 1, %s4
  %s7 = scalar_select 0, %s6, %s4
  $region1: #{_ddqn_apply.1} parent=0
    #allocation2 [shape = 'u8[196608]{0}', space=vmem, size = 0x30000, scoped, tag = 'input window, operand 1, single buffered']
    #allocation3 [shape = 's32[1]{0}', space=sflag, size = 0x4, scoped, tag = 'scoped memory for _ddqn_apply.1']
    %8 = vsyncpa [#allocation3], 0
    // Predicated region
    $region2: #{_ddqn_apply.1} parent=1 // pred_check
      _
    $region3: #{_ddqn_apply.1} parent=1 // pred_check_branch
      %10 = sbr.rel (0) target = $region5
    $region4: #{_ddqn_apply.1} parent=1 // pred_region
      _
    $region5: #{_ddqn_apply.1} parent=1 // pred_fallthru
      _
    // Predicated region
    $region6: #{_ddqn_apply.1} parent=1 // pred_check
      _
    $region7: #{_ddqn_apply.1} parent=1 // pred_check_branch
      %12 = sbr.rel (0) target = $region9
    $region8: #{_ddqn_apply.1} parent=1 // pred_region
      %14 = vsyncadd [#allocation3], 0
      %s15 = sshll.u32 %s1, 4
      %s16 = int_to_ptr.hbm [resolvable:$true] %s15
      %s17 = sshll.u32 [#allocation2], 4
      %s18 = int_to_ptr.vmem [resolvable:$true] %s17
      %23 = dma.hbm_to_vmem [thread:$0]  %s16, 6144, %s18, [#allocation3], 64, 64, 4
    $region9: #{_ddqn_apply.1} parent=1 // pred_fallthru
      _
    // Predicated region
    $region10: #{_ddqn_apply.1} parent=1 // pred_check
      _
    $region11: #{_ddqn_apply.1} parent=1 // pred_check_branch
      %25 = sbr.rel (0) target = $region13
    $region12: #{_ddqn_apply.1} parent=1 // pred_region
      _
    $region13: #{_ddqn_apply.1} parent=1 // pred_fallthru
      _
    // Predicated region
    $region14: #{_ddqn_apply.1} parent=1 // pred_check
      _
    $region15: #{_ddqn_apply.1} parent=1 // pred_check_branch
      %27 = sbr.rel (0) target = $region17
    $region16: #{_ddqn_apply.1} parent=1 // pred_region
      %29 = dma.done [#allocation3], 6144
    $region17: #{_ddqn_apply.1} parent=1 // pred_fallthru
      _
    %v30 = vld [vmem:[%s0] sm:$0xf]
    %v31 = vld [vmem:[%s0 + $0x4] sm:$0xf]
    %v32 = vld [vmem:[#allocation2] sm:$0xf]
    %v33 = vld [vmem:[#allocation2 + $0x4] sm:$0xf]
    %v34 = vld [vmem:[#allocation2 + $0x8] sm:$0xf]
    %v35 = vld [vmem:[#allocation2 + $0xc] sm:$0xf]
    %v36 = vld [vmem:[#allocation2 + $0x10] sm:$0xf]
    %v37 = vld [vmem:[#allocation2 + $0x14] sm:$0xf]
    %v38 = vld [vmem:[#allocation2 + $0x18] sm:$0xf]
    %v39 = vld [vmem:[#allocation2 + $0x1c] sm:$0xf]
    %v40 = vld [vmem:[#allocation2 + $0x20] sm:$0xf]
    %v41 = vld [vmem:[#allocation2 + $0x24] sm:$0xf]
    %v42 = vld [vmem:[#allocation2 + $0x28] sm:$0xf]
    %v43 = vld [vmem:[#allocation2 + $0x2c] sm:$0xf]
    %v44 = vld [vmem:[#allocation2 + $0x30] sm:$0xf]
    %v45 = vld [vmem:[#allocation2 + $0x34] sm:$0xf]
    %v46 = vld [vmem:[#allocation2 + $0x38] sm:$0xf]
    %v47 = vld [vmem:[#allocation2 + $0x3c] sm:$0xf]
    %v48 = vld [vmem:[%s2] sm:$0x1]
    %v50 = vperm.slane %v48, 0
    %v54 = vunpack.c.l.b16 %v30
    %v55 = vunpack.c.l.b16 %v31
    %v56 = vpack.c.b16 %v55, %v54
    %v74 = vunpack.c.l.b16 %v32
    %v75 = vunpack.c.l.b16 %v33
    %v76 = vunpack.c.l.b16 %v34
    %v77 = vunpack.c.l.b16 %v35
    %v78 = vunpack.c.l.b16 %v36
    %v79 = vunpack.c.l.b16 %v37
    %v80 = vunpack.c.l.b16 %v38
    %v81 = vunpack.c.l.b16 %v39
    %v82 = vunpack.c.l.b16 %v40
    %v83 = vunpack.c.l.b16 %v41
    %v84 = vunpack.c.l.b16 %v42
    %v85 = vunpack.c.l.b16 %v43
    %v86 = vunpack.c.l.b16 %v44
    %v87 = vunpack.c.l.b16 %v45
    %v88 = vunpack.c.l.b16 %v46
    %v89 = vunpack.c.l.b16 %v47
    %v90 = vpack.c.b16 %v75, %v74
    %v91 = vpack.c.b16 %v77, %v76
    %v92 = vpack.c.b16 %v79, %v78
    %v93 = vpack.c.b16 %v81, %v80
    %v94 = vpack.c.b16 %v83, %v82
    %v95 = vpack.c.b16 %v85, %v84
    %v96 = vpack.c.b16 %v87, %v86
    %v97 = vpack.c.b16 %v89, %v88
    %106 = vmatpush.bf16.msra.mxu0 %v97
    %107 = vmatpush.bf16.msra.mxu0 %v96
    %108 = vmatpush.bf16.msra.mxu0 %v95
    %109 = vmatpush.bf16.msra.mxu0 %v94
    %110 = vmatpush.bf16.msra.mxu0 %v93
    %111 = vmatpush.bf16.msra.mxu0 %v92
    %112 = vmatpush.bf16.msra.mxu0 %v91
    %113 = vmatpush.bf16.msra.mxu0 %v90
    %114 = vmatmul.bf16.gmra.mxu0 %v56
    %v115 = vpop.f32.mrf.mxu0
    %v116 = vadd.f32 %v50, %v115
    %v117 = vpop.f32.mrf.mxu0
    %v118 = vadd.f32 %v50, %v117
    %119 = vdwg.mxu0
    %v120 = vmax.f32 %v116, 0.0
    %v121 = vmax.f32 %v118, 0.0
    %v122 = vpack.c.bf16 %v121, %v120
    %s123 = scalar_lea.vmem [#allocation2], 64
    %v124 = vld [vmem:[%s123] sm:$0xf]
    %v125 = vld [vmem:[%s123 + $0x4] sm:$0xf]
    %v126 = vld [vmem:[%s123 + $0x8] sm:$0xf]
    %v127 = vld [vmem:[%s123 + $0xc] sm:$0xf]
    %v128 = vld [vmem:[%s123 + $0x10] sm:$0xf]
    %v129 = vld [vmem:[%s123 + $0x14] sm:$0xf]
    %v130 = vld [vmem:[%s123 + $0x18] sm:$0xf]
    %v131 = vld [vmem:[%s123 + $0x1c] sm:$0xf]
    %v132 = vld [vmem:[%s123 + $0x20] sm:$0xf]
    %v133 = vld [vmem:[%s123 + $0x24] sm:$0xf]
    %v134 = vld [vmem:[%s123 + $0x28] sm:$0xf]
    %v135 = vld [vmem:[%s123 + $0x2c] sm:$0xf]
    %v136 = vld [vmem:[%s123 + $0x30] sm:$0xf]
    %v137 = vld [vmem:[%s123 + $0x34] sm:$0xf]
    %v138 = vld [vmem:[%s123 + $0x38] sm:$0xf]
    %v139 = vld [vmem:[%s123 + $0x3c] sm:$0xf]
    %s140 = scalar_lea.vmem %s2, 1
    %v141 = vld [vmem:[%s140] sm:$0x1]
    %v143 = vperm.slane %v141, 0
    %v161 = vunpack.c.l.b16 %v124
    %v162 = vunpack.c.l.b16 %v125
    %v163 = vunpack.c.l.b16 %v126
    %v164 = vunpack.c.l.b16 %v127
    %v165 = vunpack.c.l.b16 %v128
    %v166 = vunpack.c.l.b16 %v129
    %v167 = vunpack.c.l.b16 %v130
    %v168 = vunpack.c.l.b16 %v131
    %v169 = vunpack.c.l.b16 %v132
    %v170 = vunpack.c.l.b16 %v133
    %v171 = vunpack.c.l.b16 %v134
    %v172 = vunpack.c.l.b16 %v135
    %v173 = vunpack.c.l.b16 %v136
    %v174 = vunpack.c.l.b16 %v137
    %v175 = vunpack.c.l.b16 %v138
    %v176 = vunpack.c.l.b16 %v139
    %v177 = vpack.c.b16 %v162, %v161
    %v178 = vpack.c.b16 %v164, %v163
    %v179 = vpack.c.b16 %v166, %v165
    %v180 = vpack.c.b16 %v168, %v167
    %v181 = vpack.c.b16 %v170, %v169
    %v182 = vpack.c.b16 %v172, %v171
    %v183 = vpack.c.b16 %v174, %v173
    %v184 = vpack.c.b16 %v176, %v175
    %193 = vmatpush.bf16.msra.mxu0 %v184
    %194 = vmatpush.bf16.msra.mxu0 %v183
    %195 = vmatpush.bf16.msra.mxu0 %v182
    %196 = vmatpush.bf16.msra.mxu0 %v181
    %197 = vmatpush.bf16.msra.mxu0 %v180
    %198 = vmatpush.bf16.msra.mxu0 %v179
    %199 = vmatpush.bf16.msra.mxu0 %v178
    %200 = vmatpush.bf16.msra.mxu0 %v177
    %201 = vmatmul.bf16.gmra.mxu0 %v122
    %v202 = vpop.f32.mrf.mxu0
    %v203 = vadd.f32 %v143, %v202
    %v204 = vpop.f32.mrf.mxu0
    %v205 = vadd.f32 %v143, %v204
    %206 = vdwg.mxu0
    %v207 = vmax.f32 %v203, 0.0
    %v208 = vmax.f32 %v205, 0.0
    %v209 = vpack.c.bf16 %v208, %v207
    %s210 = scalar_lea.vmem [#allocation2], 128
    %v211 = vld [vmem:[%s210] sm:$0xf]
    %v212 = vld [vmem:[%s210 + $0x4] sm:$0xf]
    %v213 = vld [vmem:[%s210 + $0x8] sm:$0xf]
    %v214 = vld [vmem:[%s210 + $0xc] sm:$0xf]
    %v215 = vld [vmem:[%s210 + $0x10] sm:$0xf]
    %v216 = vld [vmem:[%s210 + $0x14] sm:$0xf]
    %v217 = vld [vmem:[%s210 + $0x18] sm:$0xf]
    %v218 = vld [vmem:[%s210 + $0x1c] sm:$0xf]
    %v219 = vld [vmem:[%s210 + $0x20] sm:$0xf]
    %v220 = vld [vmem:[%s210 + $0x24] sm:$0xf]
    %v221 = vld [vmem:[%s210 + $0x28] sm:$0xf]
    %v222 = vld [vmem:[%s210 + $0x2c] sm:$0xf]
    %v223 = vld [vmem:[%s210 + $0x30] sm:$0xf]
    %v224 = vld [vmem:[%s210 + $0x34] sm:$0xf]
    %v225 = vld [vmem:[%s210 + $0x38] sm:$0xf]
    %v226 = vld [vmem:[%s210 + $0x3c] sm:$0xf]
    %s227 = scalar_lea.vmem %s2, 2
    %v228 = vld [vmem:[%s227] sm:$0x1]
    %v230 = vperm.slane %v228, 0
    %v248 = vunpack.c.l.b16 %v211
    %v249 = vunpack.c.l.b16 %v212
    %v250 = vunpack.c.l.b16 %v213
    %v251 = vunpack.c.l.b16 %v214
    %v252 = vunpack.c.l.b16 %v215
    %v253 = vunpack.c.l.b16 %v216
    %v254 = vunpack.c.l.b16 %v217
    %v255 = vunpack.c.l.b16 %v218
    %v256 = vunpack.c.l.b16 %v219
    %v257 = vunpack.c.l.b16 %v220
    %v258 = vunpack.c.l.b16 %v221
    %v259 = vunpack.c.l.b16 %v222
    %v260 = vunpack.c.l.b16 %v223
    %v261 = vunpack.c.l.b16 %v224
    %v262 = vunpack.c.l.b16 %v225
    %v263 = vunpack.c.l.b16 %v226
    %v264 = vpack.c.b16 %v249, %v248
    %v265 = vpack.c.b16 %v251, %v250
    %v266 = vpack.c.b16 %v253, %v252
    %v267 = vpack.c.b16 %v255, %v254
    %v268 = vpack.c.b16 %v257, %v256
    %v269 = vpack.c.b16 %v259, %v258
    %v270 = vpack.c.b16 %v261, %v260
    %v271 = vpack.c.b16 %v263, %v262
    %280 = vmatpush.bf16.msra.mxu0 %v271
    %281 = vmatpush.bf16.msra.mxu0 %v270
    %282 = vmatpush.bf16.msra.mxu0 %v269
    %283 = vmatpush.bf16.msra.mxu0 %v268
    %284 = vmatpush.bf16.msra.mxu0 %v267
    %285 = vmatpush.bf16.msra.mxu0 %v266
    %286 = vmatpush.bf16.msra.mxu0 %v265
    %287 = vmatpush.bf16.msra.mxu0 %v264
    %288 = vmatmul.bf16.gmra.mxu0 %v209
    %v289 = vpop.f32.mrf.mxu0
    %v290 = vadd.f32 %v230, %v289
    %v291 = vpop.f32.mrf.mxu0
    %v292 = vadd.f32 %v230, %v291
    %293 = vdwg.mxu0
    %v294 = vmax.f32 %v290, 0.0
    %v295 = vmax.f32 %v292, 0.0
    %v296 = vpack.c.bf16 %v295, %v294
    %s297 = scalar_lea.vmem [#allocation2], 192
    %v298 = vld [vmem:[%s297] sm:$0xf]
    %v299 = vld [vmem:[%s297 + $0x4] sm:$0xf]
    %v300 = vld [vmem:[%s297 + $0x8] sm:$0xf]
    %v301 = vld [vmem:[%s297 + $0xc] sm:$0xf]
    %v302 = vld [vmem:[%s297 + $0x10] sm:$0xf]
    %v303 = vld [vmem:[%s297 + $0x14] sm:$0xf]
    %v304 = vld [vmem:[%s297 + $0x18] sm:$0xf]
    %v305 = vld [vmem:[%s297 + $0x1c] sm:$0xf]
    %v306 = vld [vmem:[%s297 + $0x20] sm:$0xf]
    %v307 = vld [vmem:[%s297 + $0x24] sm:$0xf]
    %v308 = vld [vmem:[%s297 + $0x28] sm:$0xf]
    %v309 = vld [vmem:[%s297 + $0x2c] sm:$0xf]
    %v310 = vld [vmem:[%s297 + $0x30] sm:$0xf]
    %v311 = vld [vmem:[%s297 + $0x34] sm:$0xf]
    %v312 = vld [vmem:[%s297 + $0x38] sm:$0xf]
    %v313 = vld [vmem:[%s297 + $0x3c] sm:$0xf]
    %s314 = scalar_lea.vmem %s2, 3
    %v315 = vld [vmem:[%s314] sm:$0x1]
    %v317 = vperm.slane %v315, 0
    %v335 = vunpack.c.l.b16 %v298
    %v336 = vunpack.c.l.b16 %v299
    %v337 = vunpack.c.l.b16 %v300
    %v338 = vunpack.c.l.b16 %v301
    %v339 = vunpack.c.l.b16 %v302
    %v340 = vunpack.c.l.b16 %v303
    %v341 = vunpack.c.l.b16 %v304
    %v342 = vunpack.c.l.b16 %v305
    %v343 = vunpack.c.l.b16 %v306
    %v344 = vunpack.c.l.b16 %v307
    %v345 = vunpack.c.l.b16 %v308
    %v346 = vunpack.c.l.b16 %v309
    %v347 = vunpack.c.l.b16 %v310
    %v348 = vunpack.c.l.b16 %v311
    %v349 = vunpack.c.l.b16 %v312
    %v350 = vunpack.c.l.b16 %v313
    %v351 = vpack.c.b16 %v336, %v335
    %v352 = vpack.c.b16 %v338, %v337
    %v353 = vpack.c.b16 %v340, %v339
    %v354 = vpack.c.b16 %v342, %v341
    %v355 = vpack.c.b16 %v344, %v343
    %v356 = vpack.c.b16 %v346, %v345
    %v357 = vpack.c.b16 %v348, %v347
    %v358 = vpack.c.b16 %v350, %v349
    %367 = vmatpush.bf16.msra.mxu0 %v358
    %368 = vmatpush.bf16.msra.mxu0 %v357
    %369 = vmatpush.bf16.msra.mxu0 %v356
    %370 = vmatpush.bf16.msra.mxu0 %v355
    %371 = vmatpush.bf16.msra.mxu0 %v354
    %372 = vmatpush.bf16.msra.mxu0 %v353
    %373 = vmatpush.bf16.msra.mxu0 %v352
    %374 = vmatpush.bf16.msra.mxu0 %v351
    %375 = vmatmul.bf16.gmra.mxu0 %v296
    %v376 = vpop.f32.mrf.mxu0
    %v377 = vadd.f32 %v317, %v376
    %v378 = vpop.f32.mrf.mxu0
    %v379 = vadd.f32 %v317, %v378
    %380 = vdwg.mxu0
    %v381 = vmax.f32 %v377, 0.0
    %v382 = vmax.f32 %v379, 0.0
    %v383 = vpack.c.bf16 %v382, %v381
    %s384 = scalar_lea.vmem [#allocation2], 256
    %v385 = vld [vmem:[%s384] sm:$0xf]
    %v386 = vld [vmem:[%s384 + $0x4] sm:$0xf]
    %v387 = vld [vmem:[%s384 + $0x8] sm:$0xf]
    %v388 = vld [vmem:[%s384 + $0xc] sm:$0xf]
    %v389 = vld [vmem:[%s384 + $0x10] sm:$0xf]
    %v390 = vld [vmem:[%s384 + $0x14] sm:$0xf]
    %v391 = vld [vmem:[%s384 + $0x18] sm:$0xf]
    %v392 = vld [vmem:[%s384 + $0x1c] sm:$0xf]
    %v393 = vld [vmem:[%s384 + $0x20] sm:$0xf]
    %v394 = vld [vmem:[%s384 + $0x24] sm:$0xf]
    %v395 = vld [vmem:[%s384 + $0x28] sm:$0xf]
    %v396 = vld [vmem:[%s384 + $0x2c] sm:$0xf]
    %v397 = vld [vmem:[%s384 + $0x30] sm:$0xf]
    %v398 = vld [vmem:[%s384 + $0x34] sm:$0xf]
    %v399 = vld [vmem:[%s384 + $0x38] sm:$0xf]
    %v400 = vld [vmem:[%s384 + $0x3c] sm:$0xf]
    %s401 = scalar_lea.vmem %s2, 4
    %v402 = vld [vmem:[%s401] sm:$0x1]
    %v404 = vperm.slane %v402, 0
    %v422 = vunpack.c.l.b16 %v385
    %v423 = vunpack.c.l.b16 %v386
    %v424 = vunpack.c.l.b16 %v387
    %v425 = vunpack.c.l.b16 %v388
    %v426 = vunpack.c.l.b16 %v389
    %v427 = vunpack.c.l.b16 %v390
    %v428 = vunpack.c.l.b16 %v391
    %v429 = vunpack.c.l.b16 %v392
    %v430 = vunpack.c.l.b16 %v393
    %v431 = vunpack.c.l.b16 %v394
    %v432 = vunpack.c.l.b16 %v395
    %v433 = vunpack.c.l.b16 %v396
    %v434 = vunpack.c.l.b16 %v397
    %v435 = vunpack.c.l.b16 %v398
    %v436 = vunpack.c.l.b16 %v399
    %v437 = vunpack.c.l.b16 %v400
    %v438 = vpack.c.b16 %v423, %v422
    %v439 = vpack.c.b16 %v425, %v424
    %v440 = vpack.c.b16 %v427, %v426
    %v441 = vpack.c.b16 %v429, %v428
    %v442 = vpack.c.b16 %v431, %v430
    %v443 = vpack.c.b16 %v433, %v432
    %v444 = vpack.c.b16 %v435, %v434
    %v445 = vpack.c.b16 %v437, %v436
    %454 = vmatpush.bf16.msra.mxu0 %v445
    %455 = vmatpush.bf16.msra.mxu0 %v444
    %456 = vmatpush.bf16.msra.mxu0 %v443
    %457 = vmatpush.bf16.msra.mxu0 %v442
    %458 = vmatpush.bf16.msra.mxu0 %v441
    %459 = vmatpush.bf16.msra.mxu0 %v440
    %460 = vmatpush.bf16.msra.mxu0 %v439
    %461 = vmatpush.bf16.msra.mxu0 %v438
    %462 = vmatmul.bf16.gmra.mxu0 %v383
    %v463 = vpop.f32.mrf.mxu0
    %v464 = vadd.f32 %v404, %v463
    %v465 = vpop.f32.mrf.mxu0
    %v466 = vadd.f32 %v404, %v465
    %467 = vdwg.mxu0
    %v468 = vmax.f32 %v464, 0.0
    %v469 = vmax.f32 %v466, 0.0
    %v470 = vpack.c.bf16 %v469, %v468
    %s471 = scalar_lea.vmem [#allocation2], 320
    %v472 = vld [vmem:[%s471] sm:$0xf]
    %v473 = vld [vmem:[%s471 + $0x4] sm:$0xf]
    %v474 = vld [vmem:[%s471 + $0x8] sm:$0xf]
    %v475 = vld [vmem:[%s471 + $0xc] sm:$0xf]
    %v476 = vld [vmem:[%s471 + $0x10] sm:$0xf]
    %v477 = vld [vmem:[%s471 + $0x14] sm:$0xf]
    %v478 = vld [vmem:[%s471 + $0x18] sm:$0xf]
    %v479 = vld [vmem:[%s471 + $0x1c] sm:$0xf]
    %v480 = vld [vmem:[%s471 + $0x20] sm:$0xf]
    %v481 = vld [vmem:[%s471 + $0x24] sm:$0xf]
    %v482 = vld [vmem:[%s471 + $0x28] sm:$0xf]
    %v483 = vld [vmem:[%s471 + $0x2c] sm:$0xf]
    %v484 = vld [vmem:[%s471 + $0x30] sm:$0xf]
    %v485 = vld [vmem:[%s471 + $0x34] sm:$0xf]
    %v486 = vld [vmem:[%s471 + $0x38] sm:$0xf]
    %v487 = vld [vmem:[%s471 + $0x3c] sm:$0xf]
    %s488 = scalar_lea.vmem %s2, 5
    %v489 = vld [vmem:[%s488] sm:$0x1]
    %v491 = vperm.slane %v489, 0
    %v509 = vunpack.c.l.b16 %v472
    %v510 = vunpack.c.l.b16 %v473
    %v511 = vunpack.c.l.b16 %v474
    %v512 = vunpack.c.l.b16 %v475
    %v513 = vunpack.c.l.b16 %v476
    %v514 = vunpack.c.l.b16 %v477
    %v515 = vunpack.c.l.b16 %v478
    %v516 = vunpack.c.l.b16 %v479
    %v517 = vunpack.c.l.b16 %v480
    %v518 = vunpack.c.l.b16 %v481
    %v519 = vunpack.c.l.b16 %v482
    %v520 = vunpack.c.l.b16 %v483
    %v521 = vunpack.c.l.b16 %v484
    %v522 = vunpack.c.l.b16 %v485
    %v523 = vunpack.c.l.b16 %v486
    %v524 = vunpack.c.l.b16 %v487
    %v525 = vpack.c.b16 %v510, %v509
    %v526 = vpack.c.b16 %v512, %v511
    %v527 = vpack.c.b16 %v514, %v513
    %v528 = vpack.c.b16 %v516, %v515
    %v529 = vpack.c.b16 %v518, %v517
    %v530 = vpack.c.b16 %v520, %v519
    %v531 = vpack.c.b16 %v522, %v521
    %v532 = vpack.c.b16 %v524, %v523
    %541 = vmatpush.bf16.msra.mxu0 %v532
    %542 = vmatpush.bf16.msra.mxu0 %v531
    %543 = vmatpush.bf16.msra.mxu0 %v530
    %544 = vmatpush.bf16.msra.mxu0 %v529
    %545 = vmatpush.bf16.msra.mxu0 %v528
    %546 = vmatpush.bf16.msra.mxu0 %v527
    %547 = vmatpush.bf16.msra.mxu0 %v526
    %548 = vmatpush.bf16.msra.mxu0 %v525
    %549 = vmatmul.bf16.gmra.mxu0 %v470
    %v550 = vpop.f32.mrf.mxu0
    %v551 = vadd.f32 %v491, %v550
    %v552 = vpop.f32.mrf.mxu0
    %v553 = vadd.f32 %v491, %v552
    %554 = vdwg.mxu0
    %555 = vst [vmem:[%s3] sm:$0xff] %v551
    %556 = vst [vmem:[%s3 + $0x8] sm:$0xff] %v553
    // Predicated region
    $region18: #{_ddqn_apply.1} parent=1 // pred_check
      _
    $region19: #{_ddqn_apply.1} parent=1 // pred_check_branch
      %558 = sbr.rel (0) target = $region21
    $region20: #{_ddqn_apply.1} parent=1 // pred_region
      _
    $region21: #{_ddqn_apply.1} parent=1 // pred_fallthru
      _
    // Predicated region
    $region22: #{_ddqn_apply.1} parent=1 // pred_check
      _
    $region23: #{_ddqn_apply.1} parent=1 // pred_check_branch
      %560 = sbr.rel (0) target = $region25
    $region24: #{_ddqn_apply.1} parent=1 // pred_region
      _
    $region25: #{_ddqn_apply.1} parent=1 // pred_fallthru
      _
    %561 = vsyncpa [#allocation3], 1

</llo_original>
